<compile_context>
chip_gen: v7x
topology: tpu7x:2x2x1
jax: 0.10.0
libtpu: 0.0.40
codegen_flags: <defaults>
</compile_context>

<pallas_src>
import jax
import jax.numpy as jnp
from jax.experimental import pallas as pl
from jax.experimental.pallas import tpu as pltpu

LANE = 128      # lane width (last dim)
SUBLANE = 8     # f32 sublane width (second-to-last dim)


def _round_up(x, m):
    return (x + m - 1) // m * m


def _mlp_kernel(x_ref,
                w1_ref, b1_ref,
                w2_ref, b2_ref,
                w3_ref, b3_ref,
                w4_ref, b4_ref,
                w5_ref, b5_ref,
                o_ref):
    """Full 5-layer forward pass for one batch tile, entirely in VMEM.

    Matmuls run in the weights' dtype (bf16 or f32) with f32 accumulation;
    bias add / ReLU are done in f32.
    """
    cd = w1_ref.dtype
    h = jnp.dot(x_ref[...], w1_ref[...], preferred_element_type=jnp.float32) + b1_ref[...]
    h = jnp.maximum(h, 0.0)
    h = jnp.dot(h.astype(cd), w2_ref[...], preferred_element_type=jnp.float32) + b2_ref[...]
    h = jnp.maximum(h, 0.0)
    h = jnp.dot(h.astype(cd), w3_ref[...], preferred_element_type=jnp.float32) + b3_ref[...]
    h = jnp.maximum(h, 0.0)
    h = jnp.dot(h.astype(cd), w4_ref[...], preferred_element_type=jnp.float32) + b4_ref[...]
    h = jnp.maximum(h, 0.0)
    h = jnp.dot(h.astype(cd), w5_ref[...], preferred_element_type=jnp.float32) + b5_ref[...]
    o_ref[...] = h.astype(o_ref.dtype)


def simple_autoregressor_forward(x, params, *, batch_tile=None,
                                 compute_dtype=jnp.bfloat16):
    """x: [B, input_size] float32; params: list of (W [in, out], b [1, out]) f32.

    Returns [B, output_size] float32.
    """
    B, in_size = x.shape
    out_size = params[-1][0].shape[1]

    # --- choose a sublane-aligned batch tile and pad batch to a multiple of it.
    if batch_tile is None:
        batch_tile = min(_round_up(B, SUBLANE), 256)
    batch_tile = max(SUBLANE, _round_up(batch_tile, SUBLANE))
    B_p = _round_up(B, batch_tile)
    grid = (B_p // batch_tile,)

    # --- pad feature dims to lane multiples; cast weights to compute dtype.
    in_p = _round_up(in_size, LANE)
    out_p = _round_up(out_size, LANE)
    padded = []
    prev = in_p
    for li, (w, b) in enumerate(params):
        k, n = w.shape
        n_p = out_p if li == len(params) - 1 else _round_up(n, LANE)
        w_p = jnp.zeros((prev, n_p), compute_dtype).at[:k, :n].set(w.astype(compute_dtype))
        b_p = jnp.zeros((1, n_p), jnp.float32).at[:, :n].set(b.astype(jnp.float32))
        padded.append((w_p, b_p))
        prev = n_p

    x_p = jnp.zeros((B_p, in_p), compute_dtype).at[:B, :in_size].set(
        x.astype(compute_dtype))

    # --- specs: x / out pipelined over batch tiles; weights grid-resident in VMEM.
    x_spec = pl.BlockSpec((batch_tile, in_p), lambda i: (i, 0))
    o_spec = pl.BlockSpec((batch_tile, out_p), lambda i: (i, 0))
    wb_specs = []
    flat_params = []
    for (w_p, b_p) in padded:
        wb_specs.append(pl.BlockSpec(memory_space=pltpu.MemorySpace.VMEM))
        wb_specs.append(pl.BlockSpec(memory_space=pltpu.MemorySpace.VMEM))
        flat_params.extend([w_p, b_p])

    # --- explicit VMEM budget (weights + double-buffered x/o tiles + f32 h).
    cd_bytes = jnp.dtype(compute_dtype).itemsize
    w_bytes = sum(int(w.size) * w.dtype.itemsize + int(b.size) * b.dtype.itemsize
                  for w, b in padded)
    max_feat = max(in_p, out_p, max(int(w.shape[1]) for w, _ in padded))
    io_bytes = 2 * batch_tile * in_p * cd_bytes + 2 * batch_tile * out_p * 4
    h_bytes = 2 * batch_tile * max_feat * 4
    vmem_limit = int(min(110 * 2**20,
                         max(16 * 2**20, 2 * (w_bytes + io_bytes + h_bytes))))

    out_p_arr = pl.pallas_call(
        _mlp_kernel,
        out_shape=jax.ShapeDtypeStruct((B_p, out_p), jnp.float32),
        grid_spec=pltpu.PrefetchScalarGridSpec(
            num_scalar_prefetch=0,
            grid=grid,
            in_specs=[x_spec] + wb_specs,
            out_specs=o_spec,
        ),
        compiler_params=pltpu.CompilerParams(
            dimension_semantics=("parallel",),
            vmem_limit_bytes=vmem_limit,
        ),
    )(x_p, *flat_params)

    return out_p_arr[:B, :out_size]


def init_params(key, input_size, hidden_size, output_size):
    """Deterministic init mimicking nn.Linear's U(-1/sqrt(fan_in), 1/sqrt(fan_in))."""
    sizes = [(input_size, hidden_size),
             (hidden_size, hidden_size),
             (hidden_size, hidden_size),
             (hidden_size, hidden_size),
             (hidden_size, output_size)]
    params = []
    for (fan_in, fan_out) in sizes:
        key, kw, kb = jax.random.split(key, 3)
        bound = 1.0 / jnp.sqrt(jnp.float32(fan_in))
        w = jax.random.uniform(kw, (fan_in, fan_out), jnp.float32, -bound, bound)
        b = jax.random.uniform(kb, (1, fan_out), jnp.float32, -bound, bound)
        params.append((w, b))
    return params


def reference_forward(x, params):
    h = x
    for i, (w, b) in enumerate(params):
        h = h @ w + b
        if i < len(params) - 1:
            h = jnp.maximum(h, 0.0)
    return h


if __name__ == "__main__":
    key = jax.random.PRNGKey(0)
    input_size, hidden_size, output_size = 16, 32, 8
    batch = 16

    kx, kp = jax.random.split(key)
    x = jax.random.normal(kx, (batch, input_size), jnp.float32)
    params = init_params(kp, input_size, hidden_size, output_size)

    ref = reference_forward(x, params)

    # f32 path: exact match with the reference (tight tolerance).
    out_f32 = simple_autoregressor_forward(
        x, params, batch_tile=8, compute_dtype=jnp.float32)
    out_f32 = jax.block_until_ready(out_f32)
    assert out_f32.shape == (batch, output_size)
    assert jnp.allclose(out_f32, ref, atol=1e-5, rtol=1e-5)

    # bf16-matmul path (the optimized default): relaxed tolerance vs f32 reference.
    out_bf16 = simple_autoregressor_forward(
        x, params, batch_tile=8, compute_dtype=jnp.bfloat16)
    out_bf16 = jax.block_until_ready(out_bf16)
    assert out_bf16.shape == (batch, output_size)
    assert jnp.allclose(out_bf16, ref, atol=5e-2, rtol=5e-2)

    print("KERNEL_OK")
</pallas_src>

<mosaic_0001>
module attributes {stable_mosaic.version = 11 : i64} {
  func.func @_mlp_kernel(%arg0: i32, %arg1: memref<8x128xf32, #tpu.memory_space<vmem>>, %arg2: memref<128x128xf32, #tpu.memory_space<vmem>>, %arg3: memref<1x128xf32, #tpu.memory_space<vmem>>, %arg4: memref<128x128xf32, #tpu.memory_space<vmem>>, %arg5: memref<1x128xf32, #tpu.memory_space<vmem>>, %arg6: memref<128x128xf32, #tpu.memory_space<vmem>>, %arg7: memref<1x128xf32, #tpu.memory_space<vmem>>, %arg8: memref<128x128xf32, #tpu.memory_space<vmem>>, %arg9: memref<1x128xf32, #tpu.memory_space<vmem>>, %arg10: memref<128x128xf32, #tpu.memory_space<vmem>>, %arg11: memref<1x128xf32, #tpu.memory_space<vmem>>, %arg12: memref<8x128xf32, #tpu.memory_space<vmem>>) attributes {dimension_semantics = [#tpu.dimension_semantics<parallel>], iteration_bounds = array<i64: 2>, scalar_prefetch = 0 : i64, scratch_operands = 0 : i64, tpu.core_type = #tpu.core_type<tc>, window_params = [{transform_indices = @transform_0, window_bounds = array<i64: 8, 128>}, {pipeline_mode = #tpu.pipeline_mode<synchronous>, transform_indices = @transform_1, window_bounds = array<i64: 128, 128>}, {pipeline_mode = #tpu.pipeline_mode<synchronous>, transform_indices = @transform_2, window_bounds = array<i64: 1, 128>}, {pipeline_mode = #tpu.pipeline_mode<synchronous>, transform_indices = @transform_3, window_bounds = array<i64: 128, 128>}, {pipeline_mode = #tpu.pipeline_mode<synchronous>, transform_indices = @transform_4, window_bounds = array<i64: 1, 128>}, {pipeline_mode = #tpu.pipeline_mode<synchronous>, transform_indices = @transform_5, window_bounds = array<i64: 128, 128>}, {pipeline_mode = #tpu.pipeline_mode<synchronous>, transform_indices = @transform_6, window_bounds = array<i64: 1, 128>}, {pipeline_mode = #tpu.pipeline_mode<synchronous>, transform_indices = @transform_7, window_bounds = array<i64: 128, 128>}, {pipeline_mode = #tpu.pipeline_mode<synchronous>, transform_indices = @transform_8, window_bounds = array<i64: 1, 128>}, {pipeline_mode = #tpu.pipeline_mode<synchronous>, transform_indices = @transform_9, window_bounds = array<i64: 128, 128>}, {pipeline_mode = #tpu.pipeline_mode<synchronous>, transform_indices = @transform_10, window_bounds = array<i64: 1, 128>}, {transform_indices = @transform_11, window_bounds = array<i64: 8, 128>}]} {
    %c0 = arith.constant 0 : index
    %c0_0 = arith.constant 0 : index
    %0 = vector.load %arg1[%c0, %c0_0] : memref<8x128xf32, #tpu.memory_space<vmem>>, vector<8x128xf32>
    %c0_1 = arith.constant 0 : index
    %c0_2 = arith.constant 0 : index
    %1 = vector.load %arg2[%c0_1, %c0_2] : memref<128x128xf32, #tpu.memory_space<vmem>>, vector<128x128xf32>
    %cst = arith.constant dense<0.000000e+00> : vector<8x128xf32>
    %2 = tpu.matmul %0, %1, %cst {dimension_numbers = #tpu.dot_dimension_numbers<[1], [0], [0], [1], [0, 0, 1, 1], [], []>} : vector<8x128xf32>, vector<128x128xf32>, vector<8x128xf32> -> vector<8x128xf32>
    %c0_3 = arith.constant 0 : index
    %c0_4 = arith.constant 0 : index
    %3 = vector.load %arg3[%c0_3, %c0_4] : memref<1x128xf32, #tpu.memory_space<vmem>>, vector<1x128xf32>
    %4 = vector.broadcast %3 : vector<1x128xf32> to vector<8x128xf32>
    %5 = arith.addf %2, %4 : vector<8x128xf32>
    %cst_5 = arith.constant 0.000000e+00 : f32
    %6 = vector.broadcast %cst_5 : f32 to vector<8x128xf32>
    %7 = arith.maximumf %5, %6 : vector<8x128xf32>
    %c0_6 = arith.constant 0 : index
    %c0_7 = arith.constant 0 : index
    %8 = vector.load %arg4[%c0_6, %c0_7] : memref<128x128xf32, #tpu.memory_space<vmem>>, vector<128x128xf32>
    %cst_8 = arith.constant dense<0.000000e+00> : vector<8x128xf32>
    %9 = tpu.matmul %7, %8, %cst_8 {dimension_numbers = #tpu.dot_dimension_numbers<[1], [0], [0], [1], [0, 0, 1, 1], [], []>} : vector<8x128xf32>, vector<128x128xf32>, vector<8x128xf32> -> vector<8x128xf32>
    %c0_9 = arith.constant 0 : index
    %c0_10 = arith.constant 0 : index
    %10 = vector.load %arg5[%c0_9, %c0_10] : memref<1x128xf32, #tpu.memory_space<vmem>>, vector<1x128xf32>
    %11 = vector.broadcast %10 : vector<1x128xf32> to vector<8x128xf32>
    %12 = arith.addf %9, %11 : vector<8x128xf32>
    %cst_11 = arith.constant 0.000000e+00 : f32
    %13 = vector.broadcast %cst_11 : f32 to vector<8x128xf32>
    %14 = arith.maximumf %12, %13 : vector<8x128xf32>
    %c0_12 = arith.constant 0 : index
    %c0_13 = arith.constant 0 : index
    %15 = vector.load %arg6[%c0_12, %c0_13] : memref<128x128xf32, #tpu.memory_space<vmem>>, vector<128x128xf32>
    %cst_14 = arith.constant dense<0.000000e+00> : vector<8x128xf32>
    %16 = tpu.matmul %14, %15, %cst_14 {dimension_numbers = #tpu.dot_dimension_numbers<[1], [0], [0], [1], [0, 0, 1, 1], [], []>} : vector<8x128xf32>, vector<128x128xf32>, vector<8x128xf32> -> vector<8x128xf32>
    %c0_15 = arith.constant 0 : index
    %c0_16 = arith.constant 0 : index
    %17 = vector.load %arg7[%c0_15, %c0_16] : memref<1x128xf32, #tpu.memory_space<vmem>>, vector<1x128xf32>
    %18 = vector.broadcast %17 : vector<1x128xf32> to vector<8x128xf32>
    %19 = arith.addf %16, %18 : vector<8x128xf32>
    %cst_17 = arith.constant 0.000000e+00 : f32
    %20 = vector.broadcast %cst_17 : f32 to vector<8x128xf32>
    %21 = arith.maximumf %19, %20 : vector<8x128xf32>
    %c0_18 = arith.constant 0 : index
    %c0_19 = arith.constant 0 : index
    %22 = vector.load %arg8[%c0_18, %c0_19] : memref<128x128xf32, #tpu.memory_space<vmem>>, vector<128x128xf32>
    %cst_20 = arith.constant dense<0.000000e+00> : vector<8x128xf32>
    %23 = tpu.matmul %21, %22, %cst_20 {dimension_numbers = #tpu.dot_dimension_numbers<[1], [0], [0], [1], [0, 0, 1, 1], [], []>} : vector<8x128xf32>, vector<128x128xf32>, vector<8x128xf32> -> vector<8x128xf32>
    %c0_21 = arith.constant 0 : index
    %c0_22 = arith.constant 0 : index
    %24 = vector.load %arg9[%c0_21, %c0_22] : memref<1x128xf32, #tpu.memory_space<vmem>>, vector<1x128xf32>
    %25 = vector.broadcast %24 : vector<1x128xf32> to vector<8x128xf32>
    %26 = arith.addf %23, %25 : vector<8x128xf32>
    %cst_23 = arith.constant 0.000000e+00 : f32
    %27 = vector.broadcast %cst_23 : f32 to vector<8x128xf32>
    %28 = arith.maximumf %26, %27 : vector<8x128xf32>
    %c0_24 = arith.constant 0 : index
    %c0_25 = arith.constant 0 : index
    %29 = vector.load %arg10[%c0_24, %c0_25] : memref<128x128xf32, #tpu.memory_space<vmem>>, vector<128x128xf32>
    %cst_26 = arith.constant dense<0.000000e+00> : vector<8x128xf32>
    %30 = tpu.matmul %28, %29, %cst_26 {dimension_numbers = #tpu.dot_dimension_numbers<[1], [0], [0], [1], [0, 0, 1, 1], [], []>} : vector<8x128xf32>, vector<128x128xf32>, vector<8x128xf32> -> vector<8x128xf32>
    %c0_27 = arith.constant 0 : index
    %c0_28 = arith.constant 0 : index
    %31 = vector.load %arg11[%c0_27, %c0_28] : memref<1x128xf32, #tpu.memory_space<vmem>>, vector<1x128xf32>
    %32 = vector.broadcast %31 : vector<1x128xf32> to vector<8x128xf32>
    %33 = arith.addf %30, %32 : vector<8x128xf32>
    %c0_29 = arith.constant 0 : index
    %c0_30 = arith.constant 0 : index
    %34 = vector.load %arg12[%c0_29, %c0_30] : memref<8x128xf32, #tpu.memory_space<vmem>>, vector<8x128xf32>
    tpu.vector_store %arg12[%c0_29, %c0_30], %33 {strides = array<i32>} : memref<8x128xf32, #tpu.memory_space<vmem>>, vector<8x128xf32>,
    return
  }
  func.func @transform_0(%arg0: i32) -> (i32, i32) {
    %c0_i32 = arith.constant 0 : i32
    %c0_i32_0 = arith.constant 0 : i32
    return %arg0, %c0_i32 : i32, i32
  }
  func.func @transform_1(%arg0: i32) -> (i32, i32) {
    %c0_i32 = arith.constant 0 : i32
    %c0_i32_0 = arith.constant 0 : i32
    %c0_i32_1 = arith.constant 0 : i32
    return %c0_i32, %c0_i32_0 : i32, i32
  }
  func.func @transform_2(%arg0: i32) -> (i32, i32) {
    %c0_i32 = arith.constant 0 : i32
    %c0_i32_0 = arith.constant 0 : i32
    %c0_i32_1 = arith.constant 0 : i32
    return %c0_i32, %c0_i32_0 : i32, i32
  }
  func.func @transform_3(%arg0: i32) -> (i32, i32) {
    %c0_i32 = arith.constant 0 : i32
    %c0_i32_0 = arith.constant 0 : i32
    %c0_i32_1 = arith.constant 0 : i32
    return %c0_i32, %c0_i32_0 : i32, i32
  }
  func.func @transform_4(%arg0: i32) -> (i32, i32) {
    %c0_i32 = arith.constant 0 : i32
    %c0_i32_0 = arith.constant 0 : i32
    %c0_i32_1 = arith.constant 0 : i32
    return %c0_i32, %c0_i32_0 : i32, i32
  }
  func.func @transform_5(%arg0: i32) -> (i32, i32) {
    %c0_i32 = arith.constant 0 : i32
    %c0_i32_0 = arith.constant 0 : i32
    %c0_i32_1 = arith.constant 0 : i32
    return %c0_i32, %c0_i32_0 : i32, i32
  }
  func.func @transform_6(%arg0: i32) -> (i32, i32) {
    %c0_i32 = arith.constant 0 : i32
    %c0_i32_0 = arith.constant 0 : i32
    %c0_i32_1 = arith.constant 0 : i32
    return %c0_i32, %c0_i32_0 : i32, i32
  }
  func.func @transform_7(%arg0: i32) -> (i32, i32) {
    %c0_i32 = arith.constant 0 : i32
    %c0_i32_0 = arith.constant 0 : i32
    %c0_i32_1 = arith.constant 0 : i32
    return %c0_i32, %c0_i32_0 : i32, i32
  }
  func.func @transform_8(%arg0: i32) -> (i32, i32) {
    %c0_i32 = arith.constant 0 : i32
    %c0_i32_0 = arith.constant 0 : i32
    %c0_i32_1 = arith.constant 0 : i32
    return %c0_i32, %c0_i32_0 : i32, i32
  }
  func.func @transform_9(%arg0: i32) -> (i32, i32) {
    %c0_i32 = arith.constant 0 : i32
    %c0_i32_0 = arith.constant 0 : i32
    %c0_i32_1 = arith.constant 0 : i32
    return %c0_i32, %c0_i32_0 : i32, i32
  }
  func.func @transform_10(%arg0: i32) -> (i32, i32) {
    %c0_i32 = arith.constant 0 : i32
    %c0_i32_0 = arith.constant 0 : i32
    %c0_i32_1 = arith.constant 0 : i32
    return %c0_i32, %c0_i32_0 : i32, i32
  }
  func.func @transform_11(%arg0: i32) -> (i32, i32) {
    %c0_i32 = arith.constant 0 : i32
    %c0_i32_0 = arith.constant 0 : i32
    return %arg0, %c0_i32 : i32, i32
  }
}

</mosaic_0001>

<llo_original>
// kernel: tpu_custom_call.1
$region0: #{tpu_custom_call.1}
  #allocation0 [shape = 'u32[]', space=smem, size = 0x4, offset = 0x4, fixed_abs, tag = 'smem constant byte address 0x4 - core index']
  #allocation1 [shape = 'u32[144,128]{1,0:T(1,128)}', space=vmem, size = 0x12000, scoped, tag = 'internal scratch']
  %s0 = inlined_call_operand.hbm [shape: f32[16,128], index: 0, kind: input, shape index: {}]
  %s1 = inlined_call_operand.hbm [shape: f32[128,128], index: 1, kind: input, shape index: {}]
  %s2 = inlined_call_operand.vmem [shape: f32[1,128], index: 2, kind: input, shape index: {}]
  %s3 = inlined_call_operand.hbm [shape: f32[128,128], index: 3, kind: input, shape index: {}]
  %s4 = inlined_call_operand.vmem [shape: f32[1,128], index: 4, kind: input, shape index: {}]
  %s5 = inlined_call_operand.hbm [shape: f32[128,128], index: 5, kind: input, shape index: {}]
  %s6 = inlined_call_operand.vmem [shape: f32[1,128], index: 6, kind: input, shape index: {}]
  %s7 = inlined_call_operand.hbm [shape: f32[128,128], index: 7, kind: input, shape index: {}]
  %s8 = inlined_call_operand.vmem [shape: f32[1,128], index: 8, kind: input, shape index: {}]
  %s9 = inlined_call_operand.hbm [shape: f32[128,128], index: 9, kind: input, shape index: {}]
  %s10 = inlined_call_operand.vmem [shape: f32[1,128], index: 10, kind: input, shape index: {}]
  %s11 = inlined_call_operand.hbm [shape: f32[16,128], index: 11, kind: output, shape index: {}]
  %s12 = sld [smem:[#allocation0]]
  $region101: #{tpu_custom_call.1} parent=0
    _
  %s14 = ssub.s32 1, %s12
  %s15 = scalar_select 0, %s14, %s12
  $region1: #{tpu_custom_call.1} parent=0
    #allocation2 [shape = 'u8[8192]{0}', space=vmem, size = 0x2000, scoped, tag = 'input window, operand 0']
    #allocation3 [shape = 's32[2]{0}', space=sflag, size = 0x8, scoped, tag = 'scoped memory for tpu_custom_call.1']
    #allocation4 [shape = 's32[2]{0}', space=sflag, size = 0x8, scoped, tag = 'scoped memory for tpu_custom_call.1']
    #allocation5 [shape = 'u8[65536]{0}', space=vmem, size = 0x10000, scoped, tag = 'input window, operand 1, single buffered']
    #allocation6 [shape = 's32[1]{0}', space=sflag, size = 0x4, scoped, tag = 'scoped memory for tpu_custom_call.1']
    #allocation7 [shape = 'u8[65536]{0}', space=vmem, size = 0x10000, scoped, tag = 'input window, operand 3, single buffered']
    #allocation8 [shape = 'u8[65536]{0}', space=vmem, size = 0x10000, scoped, tag = 'input window, operand 5, single buffered']
    #allocation9 [shape = 's32[1]{0}', space=sflag, size = 0x4, scoped, tag = 'scoped memory for tpu_custom_call.1']
    #allocation10 [shape = 'u8[65536]{0}', space=vmem, size = 0x10000, scoped, tag = 'input window, operand 7, single buffered']
    #allocation11 [shape = 'u8[65536]{0}', space=vmem, size = 0x10000, scoped, tag = 'input window, operand 9, single buffered']
    #allocation12 [shape = 's32[1]{0}', space=sflag, size = 0x4, scoped, tag = 'scoped memory for tpu_custom_call.1']
    #allocation13 [shape = 'u8[8192]{0}', space=vmem, size = 0x2000, scoped, tag = 'output window, operand 0']
    %16 = vsyncpa [#allocation3], 0
    %s17 = scalar_lea.sflag [#allocation3], 1
    %18 = vsyncpa %s17, 0
    %19 = vsyncpa [#allocation6], 0
    %20 = vsyncpa [#allocation9], 0
    %21 = vsyncpa [#allocation12], 0
    %22 = vsyncpa [#allocation4], 0
    %s23 = scalar_lea.sflag [#allocation4], 1
    %24 = vsyncpa %s23, 0
    loop: start=0, step=1, limit=4
    $region2: #{tpu_custom_call.1} parent=1 // loop_pre_header
      _
    $region3: #{tpu_custom_call.1} parent=1 // loop_header
      %s26 = sphi 0, %s30
      %p27 = scmp.ge.s32.totalorder %s26, 4
      %s36 = sphi 0, %s38
      %s39 = sphi 0, %s36
      %s40 = sphi 0, %s39
      %s56 = sphi 0, %s40
      %s60 = sphi 0, %s60
      %s62 = sphi 0, %s60
      %s63 = sphi 0, %s62
      %s77 = sphi 0, %s63
      %s81 = sphi 0, %s81
      %s83 = sphi 0, %s81
      %s84 = sphi 0, %s83
      %s98 = sphi 0, %s84
      %s102 = sphi 0, %s102
      %s104 = sphi 0, %s102
      %s105 = sphi 0, %s104
      %s119 = sphi 0, %s105
      %s123 = sphi 0, %s123
      %s125 = sphi 0, %s123
      %s126 = sphi 0, %s125
      %s140 = sphi 0, %s126
      %s144 = sphi 0, %s144
      %s146 = sphi 0, %s144
      %s147 = sphi 0, %s146
      %s161 = sphi 0, %s147
      %s165 = sphi 0, %s165
      %s167 = sphi 0, %s165
      %s168 = sphi 0, %s167
      %s182 = sphi 0, %s168
      %s186 = sphi 0, %s186
      %s188 = sphi 0, %s186
      %s189 = sphi 0, %s188
      %s203 = sphi 0, %s189
      %s207 = sphi 0, %s207
      %s209 = sphi 0, %s207
      %s210 = sphi 0, %s209
      %s224 = sphi 0, %s210
      %s228 = sphi 0, %s228
      %s230 = sphi 0, %s228
      %s231 = sphi 0, %s230
      %s245 = sphi 0, %s231
      %s249 = sphi 0, %s249
      %s251 = sphi 0, %s249
      %s252 = sphi 0, %s251
      %s266 = sphi 0, %s252
      %s272 = sphi 0, %s274
      %s275 = sphi 0, %s272
      %s276 = sphi 0, %s275
      %s292 = sphi 0, %s276
    $region4: #{tpu_custom_call.1} parent=1 // loop_header_branch
      %29 = sbr.rel (%p27) target = $region8
    $region5: #{tpu_custom_call.1} parent=1 // loop_body
      %s31 = ssub.s32 %s26, 1
      %s32 = ssub.s32 %s26, 2
      %s33 = sadd.s32 %s26, 1
      %s34 = ssub.s32 %s26, %s33
      %p35 = scmp.eq.s32.totalorder %s34, 0
      %s37 = sadd.s32 %s36, 1
      %s38 = scalar_select %p35, %s36, %s37
      %p41 = pneg %p35
      %p42 = scmp.eq.s32.totalorder %s26, 1
      %p43 = por %p41, %p42
      %p44 = scmp.ne.s32.totalorder %s36, %s39
      %p45 = scmp.eq.s32.totalorder %s26, 0
      %p46 = por %p44, %p45
      %p47 = scmp.ne.s32.totalorder %s36, %s39
      %p48 = scmp.eq.s32.totalorder %s31, 1
      %p49 = por %p47, %p48
      %p50 = scmp.ne.s32.totalorder %s39, %s40
      %p51 = scmp.eq.s32.totalorder %s31, 0
      %p52 = por %p50, %p51
      %p53 = scmp.ne.s32.totalorder %s39, %s40
      %p54 = scmp.eq.s32.totalorder %s32, 1
      %p55 = por %p53, %p54
      %p57 = scmp.ne.s32.totalorder %s40, %s56
      %p58 = scmp.eq.s32.totalorder %s32, 0
      %p59 = por %p57, %p58
      %s61 = sadd.s32 %s60, 1
      %p64 = scmp.eq.s32.totalorder %s26, 1
      %p65 = scmp.ne.s32.totalorder %s60, %s62
      %p66 = scmp.eq.s32.totalorder %s26, 0
      %p67 = por %p65, %p66
      %p68 = scmp.ne.s32.totalorder %s60, %s62
      %p69 = scmp.eq.s32.totalorder %s31, 1
      %p70 = por %p68, %p69
      %p71 = scmp.ne.s32.totalorder %s62, %s63
      %p72 = scmp.eq.s32.totalorder %s31, 0
      %p73 = por %p71, %p72
      %p74 = scmp.ne.s32.totalorder %s62, %s63
      %p75 = scmp.eq.s32.totalorder %s32, 1
      %p76 = por %p74, %p75
      %p78 = scmp.ne.s32.totalorder %s63, %s77
      %p79 = scmp.eq.s32.totalorder %s32, 0
      %p80 = por %p78, %p79
      %s82 = sadd.s32 %s81, 1
      %p85 = scmp.eq.s32.totalorder %s26, 1
      %p86 = scmp.ne.s32.totalorder %s81, %s83
      %p87 = scmp.eq.s32.totalorder %s26, 0
      %p88 = por %p86, %p87
      %p89 = scmp.ne.s32.totalorder %s81, %s83
      %p90 = scmp.eq.s32.totalorder %s31, 1
      %p91 = por %p89, %p90
      %p92 = scmp.ne.s32.totalorder %s83, %s84
      %p93 = scmp.eq.s32.totalorder %s31, 0
      %p94 = por %p92, %p93
      %p95 = scmp.ne.s32.totalorder %s83, %s84
      %p96 = scmp.eq.s32.totalorder %s32, 1
      %p97 = por %p95, %p96
      %p99 = scmp.ne.s32.totalorder %s84, %s98
      %p100 = scmp.eq.s32.totalorder %s32, 0
      %p101 = por %p99, %p100
      %s103 = sadd.s32 %s102, 1
      %p106 = scmp.eq.s32.totalorder %s26, 1
      %p107 = scmp.ne.s32.totalorder %s102, %s104
      %p108 = scmp.eq.s32.totalorder %s26, 0
      %p109 = por %p107, %p108
      %p110 = scmp.ne.s32.totalorder %s102, %s104
      %p111 = scmp.eq.s32.totalorder %s31, 1
      %p112 = por %p110, %p111
      %p113 = scmp.ne.s32.totalorder %s104, %s105
      %p114 = scmp.eq.s32.totalorder %s31, 0
      %p115 = por %p113, %p114
      %p116 = scmp.ne.s32.totalorder %s104, %s105
      %p117 = scmp.eq.s32.totalorder %s32, 1
      %p118 = por %p116, %p117
      %p120 = scmp.ne.s32.totalorder %s105, %s119
      %p121 = scmp.eq.s32.totalorder %s32, 0
      %p122 = por %p120, %p121
      %s124 = sadd.s32 %s123, 1
      %p127 = scmp.eq.s32.totalorder %s26, 1
      %p128 = scmp.ne.s32.totalorder %s123, %s125
      %p129 = scmp.eq.s32.totalorder %s26, 0
      %p130 = por %p128, %p129
      %p131 = scmp.ne.s32.totalorder %s123, %s125
      %p132 = scmp.eq.s32.totalorder %s31, 1
      %p133 = por %p131, %p132
      %p134 = scmp.ne.s32.totalorder %s125, %s126
      %p135 = scmp.eq.s32.totalorder %s31, 0
      %p136 = por %p134, %p135
      %p137 = scmp.ne.s32.totalorder %s125, %s126
      %p138 = scmp.eq.s32.totalorder %s32, 1
      %p139 = por %p137, %p138
      %p141 = scmp.ne.s32.totalorder %s126, %s140
      %p142 = scmp.eq.s32.totalorder %s32, 0
      %p143 = por %p141, %p142
      %s145 = sadd.s32 %s144, 1
      %p148 = scmp.eq.s32.totalorder %s26, 1
      %p149 = scmp.ne.s32.totalorder %s144, %s146
      %p150 = scmp.eq.s32.totalorder %s26, 0
      %p151 = por %p149, %p150
      %p152 = scmp.ne.s32.totalorder %s144, %s146
      %p153 = scmp.eq.s32.totalorder %s31, 1
      %p154 = por %p152, %p153
      %p155 = scmp.ne.s32.totalorder %s146, %s147
      %p156 = scmp.eq.s32.totalorder %s31, 0
      %p157 = por %p155, %p156
      %p158 = scmp.ne.s32.totalorder %s146, %s147
      %p159 = scmp.eq.s32.totalorder %s32, 1
      %p160 = por %p158, %p159
      %p162 = scmp.ne.s32.totalorder %s147, %s161
      %p163 = scmp.eq.s32.totalorder %s32, 0
      %p164 = por %p162, %p163
      %s166 = sadd.s32 %s165, 1
      %p169 = scmp.eq.s32.totalorder %s26, 1
      %p170 = scmp.ne.s32.totalorder %s165, %s167
      %p171 = scmp.eq.s32.totalorder %s26, 0
      %p172 = por %p170, %p171
      %p173 = scmp.ne.s32.totalorder %s165, %s167
      %p174 = scmp.eq.s32.totalorder %s31, 1
      %p175 = por %p173, %p174
      %p176 = scmp.ne.s32.totalorder %s167, %s168
      %p177 = scmp.eq.s32.totalorder %s31, 0
      %p178 = por %p176, %p177
      %p179 = scmp.ne.s32.totalorder %s167, %s168
      %p180 = scmp.eq.s32.totalorder %s32, 1
      %p181 = por %p179, %p180
      %p183 = scmp.ne.s32.totalorder %s168, %s182
      %p184 = scmp.eq.s32.totalorder %s32, 0
      %p185 = por %p183, %p184
      %s187 = sadd.s32 %s186, 1
      %p190 = scmp.eq.s32.totalorder %s26, 1
      %p191 = scmp.ne.s32.totalorder %s186, %s188
      %p192 = scmp.eq.s32.totalorder %s26, 0
      %p193 = por %p191, %p192
      %p194 = scmp.ne.s32.totalorder %s186, %s188
      %p195 = scmp.eq.s32.totalorder %s31, 1
      %p196 = por %p194, %p195
      %p197 = scmp.ne.s32.totalorder %s188, %s189
      %p198 = scmp.eq.s32.totalorder %s31, 0
      %p199 = por %p197, %p198
      %p200 = scmp.ne.s32.totalorder %s188, %s189
      %p201 = scmp.eq.s32.totalorder %s32, 1
      %p202 = por %p200, %p201
      %p204 = scmp.ne.s32.totalorder %s189, %s203
      %p205 = scmp.eq.s32.totalorder %s32, 0
      %p206 = por %p204, %p205
      %s208 = sadd.s32 %s207, 1
      %p211 = scmp.eq.s32.totalorder %s26, 1
      %p212 = scmp.ne.s32.totalorder %s207, %s209
      %p213 = scmp.eq.s32.totalorder %s26, 0
      %p214 = por %p212, %p213
      %p215 = scmp.ne.s32.totalorder %s207, %s209
      %p216 = scmp.eq.s32.totalorder %s31, 1
      %p217 = por %p215, %p216
      %p218 = scmp.ne.s32.totalorder %s209, %s210
      %p219 = scmp.eq.s32.totalorder %s31, 0
      %p220 = por %p218, %p219
      %p221 = scmp.ne.s32.totalorder %s209, %s210
      %p222 = scmp.eq.s32.totalorder %s32, 1
      %p223 = por %p221, %p222
      %p225 = scmp.ne.s32.totalorder %s210, %s224
      %p226 = scmp.eq.s32.totalorder %s32, 0
      %p227 = por %p225, %p226
      %s229 = sadd.s32 %s228, 1
      %p232 = scmp.eq.s32.totalorder %s26, 1
      %p233 = scmp.ne.s32.totalorder %s228, %s230
      %p234 = scmp.eq.s32.totalorder %s26, 0
      %p235 = por %p233, %p234
      %p236 = scmp.ne.s32.totalorder %s228, %s230
      %p237 = scmp.eq.s32.totalorder %s31, 1
      %p238 = por %p236, %p237
      %p239 = scmp.ne.s32.totalorder %s230, %s231
      %p240 = scmp.eq.s32.totalorder %s31, 0
      %p241 = por %p239, %p240
      %p242 = scmp.ne.s32.totalorder %s230, %s231
      %p243 = scmp.eq.s32.totalorder %s32, 1
      %p244 = por %p242, %p243
      %p246 = scmp.ne.s32.totalorder %s231, %s245
      %p247 = scmp.eq.s32.totalorder %s32, 0
      %p248 = por %p246, %p247
      %s250 = sadd.s32 %s249, 1
      %p253 = scmp.eq.s32.totalorder %s26, 1
      %p254 = scmp.ne.s32.totalorder %s249, %s251
      %p255 = scmp.eq.s32.totalorder %s26, 0
      %p256 = por %p254, %p255
      %p257 = scmp.ne.s32.totalorder %s249, %s251
      %p258 = scmp.eq.s32.totalorder %s31, 1
      %p259 = por %p257, %p258
      %p260 = scmp.ne.s32.totalorder %s251, %s252
      %p261 = scmp.eq.s32.totalorder %s31, 0
      %p262 = por %p260, %p261
      %p263 = scmp.ne.s32.totalorder %s251, %s252
      %p264 = scmp.eq.s32.totalorder %s32, 1
      %p265 = por %p263, %p264
      %p267 = scmp.ne.s32.totalorder %s252, %s266
      %p268 = scmp.eq.s32.totalorder %s32, 0
      %p269 = por %p267, %p268
      %s270 = ssub.s32 %s26, %s33
      %p271 = scmp.eq.s32.totalorder %s270, 0
      %s273 = sadd.s32 %s272, 1
      %s274 = scalar_select %p271, %s272, %s273
      %p277 = pneg %p271
      %p278 = scmp.eq.s32.totalorder %s26, 1
      %p279 = por %p277, %p278
      %p280 = scmp.ne.s32.totalorder %s272, %s275
      %p281 = scmp.eq.s32.totalorder %s26, 0
      %p282 = por %p280, %p281
      %p283 = scmp.ne.s32.totalorder %s272, %s275
      %p284 = scmp.eq.s32.totalorder %s31, 1
      %p285 = por %p283, %p284
      %p286 = scmp.ne.s32.totalorder %s275, %s276
      %p287 = scmp.eq.s32.totalorder %s31, 0
      %p288 = por %p286, %p287
      %p289 = scmp.ne.s32.totalorder %s275, %s276
      %p290 = scmp.eq.s32.totalorder %s32, 1
      %p291 = por %p289, %p290
      %p293 = scmp.ne.s32.totalorder %s276, %s292
      %p294 = scmp.eq.s32.totalorder %s32, 0
      %p295 = por %p293, %p294
      %p296 = scmp.le.s32.totalorder 1, %s26
      %p297 = scmp.lt.s32.totalorder %s26, 3
      %p298 = pnand %p296, %p297
      %p299 = pneg %p298
      // Predicated region
      $region9: #{tpu_custom_call.1} parent=5 // pred_check
        _
      $region10: #{tpu_custom_call.1} parent=5 // pred_check_branch
        %301 = sbr.rel (%p298) target = $region12
      $region11: #{tpu_custom_call.1} parent=5 // pred_region
        %s302 = ssub.s32 %s26, 1
        // Predicated region
        $region13: #{tpu_custom_call.1} parent=11 // pred_check
          %p303 = pneg %p73
        $region14: #{tpu_custom_call.1} parent=11 // pred_check_branch
          %305 = sbr.rel (%p303) target = $region16
        $region15: #{tpu_custom_call.1} parent=11 // pred_region
          %s307 = ssub.s32 2048, 2048
          %308 = vsyncadd [#allocation6], %s307
          %s309 = sshll.u32 [#allocation5], 4
          %s310 = int_to_ptr.vmem [resolvable:$true] %s309
          %315 = dma.hbm_to_vmem [thread:$0]  %s1, 2048, %s310, [#allocation6], 128, 128, 8
        $region16: #{tpu_custom_call.1} parent=11 // pred_fallthru
          _
        // Predicated region
        $region17: #{tpu_custom_call.1} parent=11 // pred_check
          %p316 = pneg %p94
        $region18: #{tpu_custom_call.1} parent=11 // pred_check_branch
          %318 = sbr.rel (%p316) target = $region20
        $region19: #{tpu_custom_call.1} parent=11 // pred_region
          _
        $region20: #{tpu_custom_call.1} parent=11 // pred_fallthru
          _
        // Predicated region
        $region21: #{tpu_custom_call.1} parent=11 // pred_check
          %p319 = pneg %p115
        $region22: #{tpu_custom_call.1} parent=11 // pred_check_branch
          %321 = sbr.rel (%p319) target = $region24
        $region23: #{tpu_custom_call.1} parent=11 // pred_region
          %s323 = ssub.s32 2048, 2048
          %324 = vsyncadd [#allocation6], %s323
          %s325 = sshll.u32 [#allocation7], 4
          %s326 = int_to_ptr.vmem [resolvable:$true] %s325
          %331 = dma.hbm_to_vmem [thread:$0]  %s3, 2048, %s326, [#allocation6], 128, 128, 8
        $region24: #{tpu_custom_call.1} parent=11 // pred_fallthru
          _
        // Predicated region
        $region25: #{tpu_custom_call.1} parent=11 // pred_check
          %p332 = pneg %p136
        $region26: #{tpu_custom_call.1} parent=11 // pred_check_branch
          %334 = sbr.rel (%p332) target = $region28
        $region27: #{tpu_custom_call.1} parent=11 // pred_region
          _
        $region28: #{tpu_custom_call.1} parent=11 // pred_fallthru
          _
        // Predicated region
        $region29: #{tpu_custom_call.1} parent=11 // pred_check
          %p335 = pneg %p157
        $region30: #{tpu_custom_call.1} parent=11 // pred_check_branch
          %337 = sbr.rel (%p335) target = $region32
        $region31: #{tpu_custom_call.1} parent=11 // pred_region
          %s339 = ssub.s32 2048, 2048
          %340 = vsyncadd [#allocation9], %s339
          %s341 = sshll.u32 [#allocation8], 4
          %s342 = int_to_ptr.vmem [resolvable:$true] %s341
          %347 = dma.hbm_to_vmem [thread:$0]  %s5, 2048, %s342, [#allocation9], 128, 128, 8
        $region32: #{tpu_custom_call.1} parent=11 // pred_fallthru
          _
        // Predicated region
        $region33: #{tpu_custom_call.1} parent=11 // pred_check
          %p348 = pneg %p178
        $region34: #{tpu_custom_call.1} parent=11 // pred_check_branch
          %350 = sbr.rel (%p348) target = $region36
        $region35: #{tpu_custom_call.1} parent=11 // pred_region
          _
        $region36: #{tpu_custom_call.1} parent=11 // pred_fallthru
          _
        // Predicated region
        $region37: #{tpu_custom_call.1} parent=11 // pred_check
          %p351 = pneg %p199
        $region38: #{tpu_custom_call.1} parent=11 // pred_check_branch
          %353 = sbr.rel (%p351) target = $region40
        $region39: #{tpu_custom_call.1} parent=11 // pred_region
          %s355 = ssub.s32 2048, 2048
          %356 = vsyncadd [#allocation9], %s355
          %s357 = sshll.u32 [#allocation10], 4
          %s358 = int_to_ptr.vmem [resolvable:$true] %s357
          %363 = dma.hbm_to_vmem [thread:$0]  %s7, 2048, %s358, [#allocation9], 128, 128, 8
        $region40: #{tpu_custom_call.1} parent=11 // pred_fallthru
          _
        // Predicated region
        $region41: #{tpu_custom_call.1} parent=11 // pred_check
          %p364 = pneg %p220
        $region42: #{tpu_custom_call.1} parent=11 // pred_check_branch
          %366 = sbr.rel (%p364) target = $region44
        $region43: #{tpu_custom_call.1} parent=11 // pred_region
          _
        $region44: #{tpu_custom_call.1} parent=11 // pred_fallthru
          _
        // Predicated region
        $region45: #{tpu_custom_call.1} parent=11 // pred_check
          %p367 = pneg %p241
        $region46: #{tpu_custom_call.1} parent=11 // pred_check_branch
          %369 = sbr.rel (%p367) target = $region48
        $region47: #{tpu_custom_call.1} parent=11 // pred_region
          %s371 = ssub.s32 2048, 2048
          %372 = vsyncadd [#allocation12], %s371
          %s373 = sshll.u32 [#allocation11], 4
          %s374 = int_to_ptr.vmem [resolvable:$true] %s373
          %379 = dma.hbm_to_vmem [thread:$0]  %s9, 2048, %s374, [#allocation12], 128, 128, 8
        $region48: #{tpu_custom_call.1} parent=11 // pred_fallthru
          _
        // Predicated region
        $region49: #{tpu_custom_call.1} parent=11 // pred_check
          %p380 = pneg %p262
        $region50: #{tpu_custom_call.1} parent=11 // pred_check_branch
          %382 = sbr.rel (%p380) target = $region52
        $region51: #{tpu_custom_call.1} parent=11 // pred_region
          _
        $region52: #{tpu_custom_call.1} parent=11 // pred_fallthru
          _
      $region12: #{tpu_custom_call.1} parent=5 // pred_fallthru
        _
      %p383 = scmp.lt.s32.totalorder %s26, 2
      // Predicated region
      $region53: #{tpu_custom_call.1} parent=5 // pred_check
        %p384 = pneg %p383
      $region54: #{tpu_custom_call.1} parent=5 // pred_check_branch
        %386 = sbr.rel (%p384) target = $region56
      $region55: #{tpu_custom_call.1} parent=5 // pred_region
        // Predicated region
        $region57: #{tpu_custom_call.1} parent=55 // pred_check
          %p387 = pneg %p46
        $region58: #{tpu_custom_call.1} parent=55 // pred_check_branch
          %389 = sbr.rel (%p387) target = $region60
        $region59: #{tpu_custom_call.1} parent=55 // pred_region
          %s390 = sand.u32 %s36, 1
          %s391 = scalar_lea.sflag [#allocation3], %s390
          %s392 = sand.u32 %s36, 1
          %s393 = smul.addr %s392, 8
          %s394 = scalar_lea.vmem [#allocation2], %s393
          %s396 = ssub.s32 128, 128
          %397 = vsyncadd %s391, %s396
          %s398 = smul.addr %s26, 128
          %s399 = scalar_lea.hbm %s0, %s398
          %s401 = sshll.u32 %s394, 4
          %s402 = int_to_ptr.vmem [resolvable:$true] %s401
          %404 = dma.hbm_to_vmem [thread:$0]  %s399, 128, %s402, %s391
        $region60: #{tpu_custom_call.1} parent=55 // pred_fallthru
          _
      $region56: #{tpu_custom_call.1} parent=5 // pred_fallthru
        _
      %p405 = scmp.le.s32.totalorder 1, %s26
      %p406 = scmp.lt.s32.totalorder %s26, 3
      %p407 = pnand %p405, %p406
      %p408 = pneg %p407
      // Predicated region
      $region61: #{tpu_custom_call.1} parent=5 // pred_check
        _
      $region62: #{tpu_custom_call.1} parent=5 // pred_check_branch
        %410 = sbr.rel (%p407) target = $region64
      $region63: #{tpu_custom_call.1} parent=5 // pred_region
        %s411 = ssub.s32 %s26, 1
        %s412 = sand.u32 %s39, 1
        %s413 = scalar_lea.sflag [#allocation3], %s412
        %s414 = sand.u32 %s39, 1
        %s415 = smul.addr %s414, 8
        %s416 = scalar_lea.vmem [#allocation2], %s415
        // Predicated region
        $region65: #{tpu_custom_call.1} parent=63 // pred_check
          %p417 = pneg %p52
        $region66: #{tpu_custom_call.1} parent=63 // pred_check_branch
          %419 = sbr.rel (%p417) target = $region68
        $region67: #{tpu_custom_call.1} parent=63 // pred_region
          %420 = dma.done %s413, 128
        $region68: #{tpu_custom_call.1} parent=63 // pred_fallthru
          _
        // Predicated region
        $region69: #{tpu_custom_call.1} parent=63 // pred_check
          %p421 = pneg %p73
        $region70: #{tpu_custom_call.1} parent=63 // pred_check_branch
          %423 = sbr.rel (%p421) target = $region72
        $region71: #{tpu_custom_call.1} parent=63 // pred_region
          %424 = dma.done [#allocation6], 2048
        $region72: #{tpu_custom_call.1} parent=63 // pred_fallthru
          _
        // Predicated region
        $region73: #{tpu_custom_call.1} parent=63 // pred_check
          %p425 = pneg %p115
        $region74: #{tpu_custom_call.1} parent=63 // pred_check_branch
          %427 = sbr.rel (%p425) target = $region76
        $region75: #{tpu_custom_call.1} parent=63 // pred_region
          %428 = dma.done [#allocation6], 2048
        $region76: #{tpu_custom_call.1} parent=63 // pred_fallthru
          _
        // Predicated region
        $region77: #{tpu_custom_call.1} parent=63 // pred_check
          %p429 = pneg %p157
        $region78: #{tpu_custom_call.1} parent=63 // pred_check_branch
          %431 = sbr.rel (%p429) target = $region80
        $region79: #{tpu_custom_call.1} parent=63 // pred_region
          %432 = dma.done [#allocation9], 2048
        $region80: #{tpu_custom_call.1} parent=63 // pred_fallthru
          _
        // Predicated region
        $region81: #{tpu_custom_call.1} parent=63 // pred_check
          %p433 = pneg %p199
        $region82: #{tpu_custom_call.1} parent=63 // pred_check_branch
          %435 = sbr.rel (%p433) target = $region84
        $region83: #{tpu_custom_call.1} parent=63 // pred_region
          %436 = dma.done [#allocation9], 2048
        $region84: #{tpu_custom_call.1} parent=63 // pred_fallthru
          _
        // Predicated region
        $region85: #{tpu_custom_call.1} parent=63 // pred_check
          %p437 = pneg %p241
        $region86: #{tpu_custom_call.1} parent=63 // pred_check_branch
          %439 = sbr.rel (%p437) target = $region88
        $region87: #{tpu_custom_call.1} parent=63 // pred_region
          %440 = dma.done [#allocation12], 2048
        $region88: #{tpu_custom_call.1} parent=63 // pred_fallthru
          _
        %s441 = sand.u32 %s39, 1
        %s442 = scalar_lea.sflag [#allocation3], %s441
        %s443 = sand.u32 %s39, 1
        %s444 = smul.addr %s443, 8
        %s445 = scalar_lea.vmem [#allocation2], %s444
        %p446 = pneg %p52
        %p447 = pneg %p49
        %p448 = pneg %p73
        %p449 = pneg %p70
        %p450 = pneg %p94
        %p451 = pneg %p91
        %p452 = pneg %p115
        %p453 = pneg %p112
        %p454 = pneg %p136
        %p455 = pneg %p133
        %p456 = pneg %p157
        %p457 = pneg %p154
        %p458 = pneg %p178
        %p459 = pneg %p175
        %p460 = pneg %p199
        %p461 = pneg %p196
        %p462 = pneg %p220
        %p463 = pneg %p217
        %p464 = pneg %p241
        %p465 = pneg %p238
        %p466 = pneg %p262
        %p467 = pneg %p259
        %p468 = pneg %p288
        %p469 = pneg %p285
        %s470 = sand.u32 %s275, 1
        %s471 = scalar_lea.sflag [#allocation4], %s470
        %s472 = sand.u32 %s275, 1
        %s473 = smul.addr %s472, 8
        %s474 = scalar_lea.vmem [#allocation13], %s473
        %v475 = vld [vmem:[%s416] sm:$0xff]
        %v476 = vld [vmem:[#allocation5] sm:$0xff]
        %v477 = vld [vmem:[#allocation5 + $0x8] sm:$0xff]
        %v478 = vld [vmem:[#allocation5 + $0x10] sm:$0xff]
        %v479 = vld [vmem:[#allocation5 + $0x18] sm:$0xff]
        %v480 = vld [vmem:[#allocation5 + $0x20] sm:$0xff]
        %v481 = vld [vmem:[#allocation5 + $0x28] sm:$0xff]
        %v482 = vld [vmem:[#allocation5 + $0x30] sm:$0xff]
        %v483 = vld [vmem:[#allocation5 + $0x38] sm:$0xff]
        %v484 = vld [vmem:[#allocation5 + $0x40] sm:$0xff]
        %v485 = vld [vmem:[#allocation5 + $0x48] sm:$0xff]
        %v486 = vld [vmem:[#allocation5 + $0x50] sm:$0xff]
        %v487 = vld [vmem:[#allocation5 + $0x58] sm:$0xff]
        %v488 = vld [vmem:[#allocation5 + $0x60] sm:$0xff]
        %v489 = vld [vmem:[#allocation5 + $0x68] sm:$0xff]
        %v490 = vld [vmem:[#allocation5 + $0x70] sm:$0xff]
        %v491 = vld [vmem:[#allocation5 + $0x78] sm:$0xff]
        %v492 = vld [vmem:[%s2] sm:$0x1]
        %v494 = vlaneseq
        %v495 = vshrl.u32 %v494, 7
        %v496 = vsub.s32 0, %v495
        %v497 = vrot.slane %v492, %v496
        %499 = vmatprep.subr.mxu0 0.0
        %500 = vmatpush1.msra.mxu0 %v476
        %501 = vmatprep.subr.mxu0 0.0
        %502 = vmatpush1.msra.mxu0 %v477
        %503 = vmatprep.subr.mxu0 0.0
        %504 = vmatpush1.msra.mxu0 %v478
        %505 = vmatprep.subr.mxu0 0.0
        %506 = vmatpush1.msra.mxu0 %v479
        %507 = vmatprep.subr.mxu0 0.0
        %508 = vmatpush1.msra.mxu0 %v480
        %509 = vmatprep.subr.mxu0 0.0
        %510 = vmatpush1.msra.mxu0 %v481
        %511 = vmatprep.subr.mxu0 0.0
        %512 = vmatpush1.msra.mxu0 %v482
        %513 = vmatprep.subr.mxu0 0.0
        %514 = vmatpush1.msra.mxu0 %v483
        %515 = vmatprep.subr.mxu0 0.0
        %516 = vmatpush1.msra.mxu0 %v484
        %517 = vmatprep.subr.mxu0 0.0
        %518 = vmatpush1.msra.mxu0 %v485
        %519 = vmatprep.subr.mxu0 0.0
        %520 = vmatpush1.msra.mxu0 %v486
        %521 = vmatprep.subr.mxu0 0.0
        %522 = vmatpush1.msra.mxu0 %v487
        %523 = vmatprep.subr.mxu0 0.0
        %524 = vmatpush1.msra.mxu0 %v488
        %525 = vmatprep.subr.mxu0 0.0
        %526 = vmatpush1.msra.mxu0 %v489
        %527 = vmatprep.subr.mxu0 0.0
        %528 = vmatpush1.msra.mxu0 %v490
        %529 = vmatprep.subr.mxu0 0.0
        %530 = vmatpush1.msra.mxu0 %v491
        %531 = vmatprep.subr.mxu0 0.0
        %532 = vmatpush1.msra.mxu0 0.0
        %533 = vmatprep.subr.mxu0 0.0
        %534 = vmatpush1.msra.mxu0 0.0
        %535 = vmatprep.subr.mxu0 0.0
        %536 = vmatpush1.msra.mxu0 0.0
        %537 = vmatprep.subr.mxu0 0.0
        %538 = vmatpush1.msra.mxu0 0.0
        %539 = vmatprep.subr.mxu0 0.0
        %540 = vmatpush1.msra.mxu0 0.0
        %541 = vmatprep.subr.mxu0 0.0
        %542 = vmatpush1.msra.mxu0 0.0
        %543 = vmatprep.subr.mxu0 0.0
        %544 = vmatpush1.msra.mxu0 0.0
        %545 = vmatprep.subr.mxu0 0.0
        %546 = vmatpush1.msra.mxu0 0.0
        %547 = vmatprep.subr.mxu0 0.0
        %548 = vmatpush1.msra.mxu0 0.0
        %549 = vmatprep.subr.mxu0 0.0
        %550 = vmatpush1.msra.mxu0 0.0
        %551 = vmatprep.subr.mxu0 0.0
        %552 = vmatpush1.msra.mxu0 0.0
        %553 = vmatprep.subr.mxu0 0.0
        %554 = vmatpush1.msra.mxu0 0.0
        %555 = vmatprep.subr.mxu0 0.0
        %556 = vmatpush1.msra.mxu0 0.0
        %557 = vmatprep.subr.mxu0 0.0
        %558 = vmatpush1.msra.mxu0 0.0
        %559 = vmatprep.subr.mxu0 0.0
        %560 = vmatpush1.msra.mxu0 0.0
        %561 = vmatprep.subr.mxu0 0.0
        %562 = vmatpush1.msra.mxu0 0.0
        %563 = vmatprep.mubr.f32.mxu0 0.0
        %564 = vmatmul.mubr.f32.gmra.mrb[0].mxu0 %v475
        %v565 = vpop.f32.mrb[0].mxu0
        %v566 = vadd.f32 %v497, %v565
        %v567 = vpop.f32.mrb[0].mxu0
        %568 = vdwg.mxu0
        %v569 = vmax.f32 %v566, 0.0
        %v570 = vld [vmem:[#allocation7] sm:$0xff]
        %v571 = vld [vmem:[#allocation7 + $0x8] sm:$0xff]
        %v572 = vld [vmem:[#allocation7 + $0x10] sm:$0xff]
        %v573 = vld [vmem:[#allocation7 + $0x18] sm:$0xff]
        %v574 = vld [vmem:[#allocation7 + $0x20] sm:$0xff]
        %v575 = vld [vmem:[#allocation7 + $0x28] sm:$0xff]
        %v576 = vld [vmem:[#allocation7 + $0x30] sm:$0xff]
        %v577 = vld [vmem:[#allocation7 + $0x38] sm:$0xff]
        %v578 = vld [vmem:[#allocation7 + $0x40] sm:$0xff]
        %v579 = vld [vmem:[#allocation7 + $0x48] sm:$0xff]
        %v580 = vld [vmem:[#allocation7 + $0x50] sm:$0xff]
        %v581 = vld [vmem:[#allocation7 + $0x58] sm:$0xff]
        %v582 = vld [vmem:[#allocation7 + $0x60] sm:$0xff]
        %v583 = vld [vmem:[#allocation7 + $0x68] sm:$0xff]
        %v584 = vld [vmem:[#allocation7 + $0x70] sm:$0xff]
        %v585 = vld [vmem:[#allocation7 + $0x78] sm:$0xff]
        %v586 = vld [vmem:[%s4] sm:$0x1]
        %v588 = vlaneseq
        %v589 = vshrl.u32 %v588, 7
        %v590 = vsub.s32 0, %v589
        %v591 = vrot.slane %v586, %v590
        %593 = vmatprep.subr.mxu0 0.0
        %594 = vmatpush1.msra.mxu0 %v570
        %595 = vmatprep.subr.mxu0 0.0
        %596 = vmatpush1.msra.mxu0 %v571
        %597 = vmatprep.subr.mxu0 0.0
        %598 = vmatpush1.msra.mxu0 %v572
        %599 = vmatprep.subr.mxu0 0.0
        %600 = vmatpush1.msra.mxu0 %v573
        %601 = vmatprep.subr.mxu0 0.0
        %602 = vmatpush1.msra.mxu0 %v574
        %603 = vmatprep.subr.mxu0 0.0
        %604 = vmatpush1.msra.mxu0 %v575
        %605 = vmatprep.subr.mxu0 0.0
        %606 = vmatpush1.msra.mxu0 %v576
        %607 = vmatprep.subr.mxu0 0.0
        %608 = vmatpush1.msra.mxu0 %v577
        %609 = vmatprep.subr.mxu0 0.0
        %610 = vmatpush1.msra.mxu0 %v578
        %611 = vmatprep.subr.mxu0 0.0
        %612 = vmatpush1.msra.mxu0 %v579
        %613 = vmatprep.subr.mxu0 0.0
        %614 = vmatpush1.msra.mxu0 %v580
        %615 = vmatprep.subr.mxu0 0.0
        %616 = vmatpush1.msra.mxu0 %v581
        %617 = vmatprep.subr.mxu0 0.0
        %618 = vmatpush1.msra.mxu0 %v582
        %619 = vmatprep.subr.mxu0 0.0
        %620 = vmatpush1.msra.mxu0 %v583
        %621 = vmatprep.subr.mxu0 0.0
        %622 = vmatpush1.msra.mxu0 %v584
        %623 = vmatprep.subr.mxu0 0.0
        %624 = vmatpush1.msra.mxu0 %v585
        %625 = vmatprep.subr.mxu0 0.0
        %626 = vmatpush1.msra.mxu0 0.0
        %627 = vmatprep.subr.mxu0 0.0
        %628 = vmatpush1.msra.mxu0 0.0
        %629 = vmatprep.subr.mxu0 0.0
        %630 = vmatpush1.msra.mxu0 0.0
        %631 = vmatprep.subr.mxu0 0.0
        %632 = vmatpush1.msra.mxu0 0.0
        %633 = vmatprep.subr.mxu0 0.0
        %634 = vmatpush1.msra.mxu0 0.0
        %635 = vmatprep.subr.mxu0 0.0
        %636 = vmatpush1.msra.mxu0 0.0
        %637 = vmatprep.subr.mxu0 0.0
        %638 = vmatpush1.msra.mxu0 0.0
        %639 = vmatprep.subr.mxu0 0.0
        %640 = vmatpush1.msra.mxu0 0.0
        %641 = vmatprep.subr.mxu0 0.0
        %642 = vmatpush1.msra.mxu0 0.0
        %643 = vmatprep.subr.mxu0 0.0
        %644 = vmatpush1.msra.mxu0 0.0
        %645 = vmatprep.subr.mxu0 0.0
        %646 = vmatpush1.msra.mxu0 0.0
        %647 = vmatprep.subr.mxu0 0.0
        %648 = vmatpush1.msra.mxu0 0.0
        %649 = vmatprep.subr.mxu0 0.0
        %650 = vmatpush1.msra.mxu0 0.0
        %651 = vmatprep.subr.mxu0 0.0
        %652 = vmatpush1.msra.mxu0 0.0
        %653 = vmatprep.subr.mxu0 0.0
        %654 = vmatpush1.msra.mxu0 0.0
        %655 = vmatprep.subr.mxu0 0.0
        %656 = vmatpush1.msra.mxu0 0.0
        %657 = vmatprep.mubr.f32.mxu0 0.0
        %658 = vmatmul.mubr.f32.gmra.mrb[0].mxu0 %v569
        %v659 = vpop.f32.mrb[0].mxu0
        %v660 = vadd.f32 %v591, %v659
        %v661 = vpop.f32.mrb[0].mxu0
        %662 = vdwg.mxu0
        %v663 = vmax.f32 %v660, 0.0
        %v664 = vld [vmem:[#allocation8] sm:$0xff]
        %v665 = vld [vmem:[#allocation8 + $0x8] sm:$0xff]
        %v666 = vld [vmem:[#allocation8 + $0x10] sm:$0xff]
        %v667 = vld [vmem:[#allocation8 + $0x18] sm:$0xff]
        %v668 = vld [vmem:[#allocation8 + $0x20] sm:$0xff]
        %v669 = vld [vmem:[#allocation8 + $0x28] sm:$0xff]
        %v670 = vld [vmem:[#allocation8 + $0x30] sm:$0xff]
        %v671 = vld [vmem:[#allocation8 + $0x38] sm:$0xff]
        %v672 = vld [vmem:[#allocation8 + $0x40] sm:$0xff]
        %v673 = vld [vmem:[#allocation8 + $0x48] sm:$0xff]
        %v674 = vld [vmem:[#allocation8 + $0x50] sm:$0xff]
        %v675 = vld [vmem:[#allocation8 + $0x58] sm:$0xff]
        %v676 = vld [vmem:[#allocation8 + $0x60] sm:$0xff]
        %v677 = vld [vmem:[#allocation8 + $0x68] sm:$0xff]
        %v678 = vld [vmem:[#allocation8 + $0x70] sm:$0xff]
        %v679 = vld [vmem:[#allocation8 + $0x78] sm:$0xff]
        %v680 = vld [vmem:[%s6] sm:$0x1]
        %v682 = vlaneseq
        %v683 = vshrl.u32 %v682, 7
        %v684 = vsub.s32 0, %v683
        %v685 = vrot.slane %v680, %v684
        %687 = vmatprep.subr.mxu0 0.0
        %688 = vmatpush1.msra.mxu0 %v664
        %689 = vmatprep.subr.mxu0 0.0
        %690 = vmatpush1.msra.mxu0 %v665
        %691 = vmatprep.subr.mxu0 0.0
        %692 = vmatpush1.msra.mxu0 %v666
        %693 = vmatprep.subr.mxu0 0.0
        %694 = vmatpush1.msra.mxu0 %v667
        %695 = vmatprep.subr.mxu0 0.0
        %696 = vmatpush1.msra.mxu0 %v668
        %697 = vmatprep.subr.mxu0 0.0
        %698 = vmatpush1.msra.mxu0 %v669
        %699 = vmatprep.subr.mxu0 0.0
        %700 = vmatpush1.msra.mxu0 %v670
        %701 = vmatprep.subr.mxu0 0.0
        %702 = vmatpush1.msra.mxu0 %v671
        %703 = vmatprep.subr.mxu0 0.0
        %704 = vmatpush1.msra.mxu0 %v672
        %705 = vmatprep.subr.mxu0 0.0
        %706 = vmatpush1.msra.mxu0 %v673
        %707 = vmatprep.subr.mxu0 0.0
        %708 = vmatpush1.msra.mxu0 %v674
        %709 = vmatprep.subr.mxu0 0.0
        %710 = vmatpush1.msra.mxu0 %v675
        %711 = vmatprep.subr.mxu0 0.0
        %712 = vmatpush1.msra.mxu0 %v676
        %713 = vmatprep.subr.mxu0 0.0
        %714 = vmatpush1.msra.mxu0 %v677
        %715 = vmatprep.subr.mxu0 0.0
        %716 = vmatpush1.msra.mxu0 %v678
        %717 = vmatprep.subr.mxu0 0.0
        %718 = vmatpush1.msra.mxu0 %v679
        %719 = vmatprep.subr.mxu0 0.0
        %720 = vmatpush1.msra.mxu0 0.0
        %721 = vmatprep.subr.mxu0 0.0
        %722 = vmatpush1.msra.mxu0 0.0
        %723 = vmatprep.subr.mxu0 0.0
        %724 = vmatpush1.msra.mxu0 0.0
        %725 = vmatprep.subr.mxu0 0.0
        %726 = vmatpush1.msra.mxu0 0.0
        %727 = vmatprep.subr.mxu0 0.0
        %728 = vmatpush1.msra.mxu0 0.0
        %729 = vmatprep.subr.mxu0 0.0
        %730 = vmatpush1.msra.mxu0 0.0
        %731 = vmatprep.subr.mxu0 0.0
        %732 = vmatpush1.msra.mxu0 0.0
        %733 = vmatprep.subr.mxu0 0.0
        %734 = vmatpush1.msra.mxu0 0.0
        %735 = vmatprep.subr.mxu0 0.0
        %736 = vmatpush1.msra.mxu0 0.0
        %737 = vmatprep.subr.mxu0 0.0
        %738 = vmatpush1.msra.mxu0 0.0
        %739 = vmatprep.subr.mxu0 0.0
        %740 = vmatpush1.msra.mxu0 0.0
        %741 = vmatprep.subr.mxu0 0.0
        %742 = vmatpush1.msra.mxu0 0.0
        %743 = vmatprep.subr.mxu0 0.0
        %744 = vmatpush1.msra.mxu0 0.0
        %745 = vmatprep.subr.mxu0 0.0
        %746 = vmatpush1.msra.mxu0 0.0
        %747 = vmatprep.subr.mxu0 0.0
        %748 = vmatpush1.msra.mxu0 0.0
        %749 = vmatprep.subr.mxu0 0.0
        %750 = vmatpush1.msra.mxu0 0.0
        %751 = vmatprep.mubr.f32.mxu0 0.0
        %752 = vmatmul.mubr.f32.gmra.mrb[0].mxu0 %v663
        %v753 = vpop.f32.mrb[0].mxu0
        %v754 = vadd.f32 %v685, %v753
        %v755 = vpop.f32.mrb[0].mxu0
        %756 = vdwg.mxu0
        %v757 = vmax.f32 %v754, 0.0
        %v758 = vld [vmem:[#allocation10] sm:$0xff]
        %v759 = vld [vmem:[#allocation10 + $0x8] sm:$0xff]
        %v760 = vld [vmem:[#allocation10 + $0x10] sm:$0xff]
        %v761 = vld [vmem:[#allocation10 + $0x18] sm:$0xff]
        %v762 = vld [vmem:[#allocation10 + $0x20] sm:$0xff]
        %v763 = vld [vmem:[#allocation10 + $0x28] sm:$0xff]
        %v764 = vld [vmem:[#allocation10 + $0x30] sm:$0xff]
        %v765 = vld [vmem:[#allocation10 + $0x38] sm:$0xff]
        %v766 = vld [vmem:[#allocation10 + $0x40] sm:$0xff]
        %v767 = vld [vmem:[#allocation10 + $0x48] sm:$0xff]
        %v768 = vld [vmem:[#allocation10 + $0x50] sm:$0xff]
        %v769 = vld [vmem:[#allocation10 + $0x58] sm:$0xff]
        %v770 = vld [vmem:[#allocation10 + $0x60] sm:$0xff]
        %v771 = vld [vmem:[#allocation10 + $0x68] sm:$0xff]
        %v772 = vld [vmem:[#allocation10 + $0x70] sm:$0xff]
        %v773 = vld [vmem:[#allocation10 + $0x78] sm:$0xff]
        %v774 = vld [vmem:[%s8] sm:$0x1]
        %v776 = vlaneseq
        %v777 = vshrl.u32 %v776, 7
        %v778 = vsub.s32 0, %v777
        %v779 = vrot.slane %v774, %v778
        %781 = vmatprep.subr.mxu0 0.0
        %782 = vmatpush1.msra.mxu0 %v758
        %783 = vmatprep.subr.mxu0 0.0
        %784 = vmatpush1.msra.mxu0 %v759
        %785 = vmatprep.subr.mxu0 0.0
        %786 = vmatpush1.msra.mxu0 %v760
        %787 = vmatprep.subr.mxu0 0.0
        %788 = vmatpush1.msra.mxu0 %v761
        %789 = vmatprep.subr.mxu0 0.0
        %790 = vmatpush1.msra.mxu0 %v762
        %791 = vmatprep.subr.mxu0 0.0
        %792 = vmatpush1.msra.mxu0 %v763
        %793 = vmatprep.subr.mxu0 0.0
        %794 = vmatpush1.msra.mxu0 %v764
        %795 = vmatprep.subr.mxu0 0.0
        %796 = vmatpush1.msra.mxu0 %v765
        %797 = vmatprep.subr.mxu0 0.0
        %798 = vmatpush1.msra.mxu0 %v766
        %799 = vmatprep.subr.mxu0 0.0
        %800 = vmatpush1.msra.mxu0 %v767
        %801 = vmatprep.subr.mxu0 0.0
        %802 = vmatpush1.msra.mxu0 %v768
        %803 = vmatprep.subr.mxu0 0.0
        %804 = vmatpush1.msra.mxu0 %v769
        %805 = vmatprep.subr.mxu0 0.0
        %806 = vmatpush1.msra.mxu0 %v770
        %807 = vmatprep.subr.mxu0 0.0
        %808 = vmatpush1.msra.mxu0 %v771
        %809 = vmatprep.subr.mxu0 0.0
        %810 = vmatpush1.msra.mxu0 %v772
        %811 = vmatprep.subr.mxu0 0.0
        %812 = vmatpush1.msra.mxu0 %v773
        %813 = vmatprep.subr.mxu0 0.0
        %814 = vmatpush1.msra.mxu0 0.0
        %815 = vmatprep.subr.mxu0 0.0
        %816 = vmatpush1.msra.mxu0 0.0
        %817 = vmatprep.subr.mxu0 0.0
        %818 = vmatpush1.msra.mxu0 0.0
        %819 = vmatprep.subr.mxu0 0.0
        %820 = vmatpush1.msra.mxu0 0.0
        %821 = vmatprep.subr.mxu0 0.0
        %822 = vmatpush1.msra.mxu0 0.0
        %823 = vmatprep.subr.mxu0 0.0
        %824 = vmatpush1.msra.mxu0 0.0
        %825 = vmatprep.subr.mxu0 0.0
        %826 = vmatpush1.msra.mxu0 0.0
        %827 = vmatprep.subr.mxu0 0.0
        %828 = vmatpush1.msra.mxu0 0.0
        %829 = vmatprep.subr.mxu0 0.0
        %830 = vmatpush1.msra.mxu0 0.0
        %831 = vmatprep.subr.mxu0 0.0
        %832 = vmatpush1.msra.mxu0 0.0
        %833 = vmatprep.subr.mxu0 0.0
        %834 = vmatpush1.msra.mxu0 0.0
        %835 = vmatprep.subr.mxu0 0.0
        %836 = vmatpush1.msra.mxu0 0.0
        %837 = vmatprep.subr.mxu0 0.0
        %838 = vmatpush1.msra.mxu0 0.0
        %839 = vmatprep.subr.mxu0 0.0
        %840 = vmatpush1.msra.mxu0 0.0
        %841 = vmatprep.subr.mxu0 0.0
        %842 = vmatpush1.msra.mxu0 0.0
        %843 = vmatprep.subr.mxu0 0.0
        %844 = vmatpush1.msra.mxu0 0.0
        %845 = vmatprep.mubr.f32.mxu0 0.0
        %846 = vmatmul.mubr.f32.gmra.mrb[0].mxu0 %v757
        %v847 = vpop.f32.mrb[0].mxu0
        %v848 = vadd.f32 %v779, %v847
        %v849 = vpop.f32.mrb[0].mxu0
        %850 = vdwg.mxu0
        %v851 = vmax.f32 %v848, 0.0
        %v852 = vld [vmem:[#allocation11] sm:$0xff]
        %v853 = vld [vmem:[#allocation11 + $0x8] sm:$0xff]
        %v854 = vld [vmem:[#allocation11 + $0x10] sm:$0xff]
        %v855 = vld [vmem:[#allocation11 + $0x18] sm:$0xff]
        %v856 = vld [vmem:[#allocation11 + $0x20] sm:$0xff]
        %v857 = vld [vmem:[#allocation11 + $0x28] sm:$0xff]
        %v858 = vld [vmem:[#allocation11 + $0x30] sm:$0xff]
        %v859 = vld [vmem:[#allocation11 + $0x38] sm:$0xff]
        %v860 = vld [vmem:[#allocation11 + $0x40] sm:$0xff]
        %v861 = vld [vmem:[#allocation11 + $0x48] sm:$0xff]
        %v862 = vld [vmem:[#allocation11 + $0x50] sm:$0xff]
        %v863 = vld [vmem:[#allocation11 + $0x58] sm:$0xff]
        %v864 = vld [vmem:[#allocation11 + $0x60] sm:$0xff]
        %v865 = vld [vmem:[#allocation11 + $0x68] sm:$0xff]
        %v866 = vld [vmem:[#allocation11 + $0x70] sm:$0xff]
        %v867 = vld [vmem:[#allocation11 + $0x78] sm:$0xff]
        %v868 = vld [vmem:[%s10] sm:$0x1]
        %v870 = vlaneseq
        %v871 = vshrl.u32 %v870, 7
        %v872 = vsub.s32 0, %v871
        %v873 = vrot.slane %v868, %v872
        %875 = vmatprep.subr.mxu0 0.0
        %876 = vmatpush1.msra.mxu0 %v852
        %877 = vmatprep.subr.mxu0 0.0
        %878 = vmatpush1.msra.mxu0 %v853
        %879 = vmatprep.subr.mxu0 0.0
        %880 = vmatpush1.msra.mxu0 %v854
        %881 = vmatprep.subr.mxu0 0.0
        %882 = vmatpush1.msra.mxu0 %v855
        %883 = vmatprep.subr.mxu0 0.0
        %884 = vmatpush1.msra.mxu0 %v856
        %885 = vmatprep.subr.mxu0 0.0
        %886 = vmatpush1.msra.mxu0 %v857
        %887 = vmatprep.subr.mxu0 0.0
        %888 = vmatpush1.msra.mxu0 %v858
        %889 = vmatprep.subr.mxu0 0.0
        %890 = vmatpush1.msra.mxu0 %v859
        %891 = vmatprep.subr.mxu0 0.0
        %892 = vmatpush1.msra.mxu0 %v860
        %893 = vmatprep.subr.mxu0 0.0
        %894 = vmatpush1.msra.mxu0 %v861
        %895 = vmatprep.subr.mxu0 0.0
        %896 = vmatpush1.msra.mxu0 %v862
        %897 = vmatprep.subr.mxu0 0.0
        %898 = vmatpush1.msra.mxu0 %v863
        %899 = vmatprep.subr.mxu0 0.0
        %900 = vmatpush1.msra.mxu0 %v864
        %901 = vmatprep.subr.mxu0 0.0
        %902 = vmatpush1.msra.mxu0 %v865
        %903 = vmatprep.subr.mxu0 0.0
        %904 = vmatpush1.msra.mxu0 %v866
        %905 = vmatprep.subr.mxu0 0.0
        %906 = vmatpush1.msra.mxu0 %v867
        %907 = vmatprep.subr.mxu0 0.0
        %908 = vmatpush1.msra.mxu0 0.0
        %909 = vmatprep.subr.mxu0 0.0
        %910 = vmatpush1.msra.mxu0 0.0
        %911 = vmatprep.subr.mxu0 0.0
        %912 = vmatpush1.msra.mxu0 0.0
        %913 = vmatprep.subr.mxu0 0.0
        %914 = vmatpush1.msra.mxu0 0.0
        %915 = vmatprep.subr.mxu0 0.0
        %916 = vmatpush1.msra.mxu0 0.0
        %917 = vmatprep.subr.mxu0 0.0
        %918 = vmatpush1.msra.mxu0 0.0
        %919 = vmatprep.subr.mxu0 0.0
        %920 = vmatpush1.msra.mxu0 0.0
        %921 = vmatprep.subr.mxu0 0.0
        %922 = vmatpush1.msra.mxu0 0.0
        %923 = vmatprep.subr.mxu0 0.0
        %924 = vmatpush1.msra.mxu0 0.0
        %925 = vmatprep.subr.mxu0 0.0
        %926 = vmatpush1.msra.mxu0 0.0
        %927 = vmatprep.subr.mxu0 0.0
        %928 = vmatpush1.msra.mxu0 0.0
        %929 = vmatprep.subr.mxu0 0.0
        %930 = vmatpush1.msra.mxu0 0.0
        %931 = vmatprep.subr.mxu0 0.0
        %932 = vmatpush1.msra.mxu0 0.0
        %933 = vmatprep.subr.mxu0 0.0
        %934 = vmatpush1.msra.mxu0 0.0
        %935 = vmatprep.subr.mxu0 0.0
        %936 = vmatpush1.msra.mxu0 0.0
        %937 = vmatprep.subr.mxu0 0.0
        %938 = vmatpush1.msra.mxu0 0.0
        %939 = vmatprep.mubr.f32.mxu0 0.0
        %940 = vmatmul.mubr.f32.gmra.mrb[0].mxu0 %v851
        %v941 = vpop.f32.mrb[0].mxu0
        %v942 = vadd.f32 %v873, %v941
        %v943 = vpop.f32.mrb[0].mxu0
        %944 = vdwg.mxu0
        %945 = vst [vmem:[%s474] sm:$0xff] %v942
        %s946 = sand.u32 %s275, 1
        %s947 = scalar_lea.sflag [#allocation4], %s946
        %s948 = sand.u32 %s275, 1
        %s949 = smul.addr %s948, 8
        %s950 = scalar_lea.vmem [#allocation13], %s949
        // Predicated region
        $region89: #{tpu_custom_call.1} parent=63 // pred_check
          %p951 = pneg %p285
        $region90: #{tpu_custom_call.1} parent=63 // pred_check_branch
          %953 = sbr.rel (%p951) target = $region92
        $region91: #{tpu_custom_call.1} parent=63 // pred_region
          %s955 = ssub.s32 128, 128
          %956 = vsyncadd %s947, %s955
          %s957 = smul.addr %s31, 128
          %s958 = scalar_lea.hbm %s11, %s957
          %s960 = sshll.u32 %s950, 4
          %s961 = int_to_ptr.vmem [resolvable:$true] %s960
          %963 = dma.vmem_to_hbm [thread:$0]  %s961, 128, %s958, %s947
        $region92: #{tpu_custom_call.1} parent=63 // pred_fallthru
          _
      $region64: #{tpu_custom_call.1} parent=5 // pred_fallthru
        _
      %p964 = scmp.le.s32.totalorder 2, %s26
      // Predicated region
      $region93: #{tpu_custom_call.1} parent=5 // pred_check
        %p965 = pneg %p964
      $region94: #{tpu_custom_call.1} parent=5 // pred_check_branch
        %967 = sbr.rel (%p965) target = $region96
      $region95: #{tpu_custom_call.1} parent=5 // pred_region
        %s968 = ssub.s32 %s26, 2
        // Predicated region
        $region97: #{tpu_custom_call.1} parent=95 // pred_check
          %p969 = pneg %p291
        $region98: #{tpu_custom_call.1} parent=95 // pred_check_branch
          %971 = sbr.rel (%p969) target = $region100
        $region99: #{tpu_custom_call.1} parent=95 // pred_region
          %s972 = sand.u32 %s276, 1
          %s973 = scalar_lea.sflag [#allocation4], %s972
          %s974 = sand.u32 %s276, 1
          %s975 = smul.addr %s974, 8
          %s976 = scalar_lea.vmem [#allocation13], %s975
          %977 = dma.done %s973, 128
        $region100: #{tpu_custom_call.1} parent=95 // pred_fallthru
          _
      $region96: #{tpu_custom_call.1} parent=5 // pred_fallthru
        _
    $region6: #{tpu_custom_call.1} parent=1 // loop_footer
      %s30 = sadd.s32 1, %s26
    $region7: #{tpu_custom_call.1} parent=1 // loop_footer_branch
      %25 = sbr.rel target = $region3
    $region8: #{tpu_custom_call.1} parent=1 // loop_exit
      _
    %978 = vsyncpa [#allocation3], 1
    %s979 = scalar_lea.sflag [#allocation3], 1
    %980 = vsyncpa %s979, 1
    %981 = vsyncpa [#allocation6], 1
    %982 = vsyncpa [#allocation9], 1
    %983 = vsyncpa [#allocation12], 1
    %984 = vsyncpa [#allocation4], 1
    %s985 = scalar_lea.sflag [#allocation4], 1
    %986 = vsyncpa %s985, 1

</llo_original>
